<compile_context>
chip_gen: v7x
topology: tpu7x:2x2x1
jax: 0.10.0
libtpu: 0.0.40
codegen_flags: <defaults>
</compile_context>

<pallas_src>
import math

import jax
import jax.numpy as jnp
from jax.experimental import pallas as pl
from jax.experimental.pallas import tpu as pltpu


def _attention_kernel(x_ref, mask_ref, wbd_ref, bias_ref, ctxsel_ref,
                      expand_ref, outsel_ref, place_ref, packed_ref):
    # x_ref: (TB, S*E) lane-flattened input block.
    xf = x_ref[...].astype(jnp.float32)

    # hidden = tanh(x @ W^T + b) in the flattened layout: one MXU matmul against
    # the block-diagonal kron(I_S, W^T); tanh runs at full lane occupancy.
    h = jnp.tanh(
        jnp.dot(xf, wbd_ref[...], preferred_element_type=jnp.float32)
        + bias_ref[...]
    )                                                           # (TB, S*E)

    # importance[b, s] = sum_e hidden[b, s, e] * ctx[e] / sqrt(E)
    # via a segment-sum selection matmul (ctx/sqrt(E) baked into the selector).
    imp = jnp.dot(h, ctxsel_ref[...], preferred_element_type=jnp.float32)  # (TB, S)
    imp = jnp.where(mask_ref[...] == 0, jnp.float32(-1e9), imp)

    # Numerically-stable softmax over the sequence axis (exact divide so each
    # row sums to 1 — denominator count is tiny, cost negligible).
    m = jnp.max(imp, axis=-1, keepdims=True)
    ex = jnp.exp(imp - m)
    attn = ex / jnp.sum(ex, axis=-1, keepdims=True)             # (TB, S)

    # output[b, e] = sum_s x[b, s, e] * attn[b, s], kept in the 256-lane layout:
    # expand attn to lanes via matmul, elementwise weight (full-lane VPU),
    # segment-sum back to E with a selection matmul.
    attn_exp = jnp.dot(attn, expand_ref[...],
                       preferred_element_type=jnp.float32)      # (TB, S*E)
    weighted = xf * attn_exp                                    # (TB, S*E)

    # Pack output (cols [0:E]) and attention weights (cols [E:E+S]) into one
    # lane-dense (TB, P) slab -> single unmasked full-lane store.
    packed = (
        jnp.dot(weighted, outsel_ref[...], preferred_element_type=jnp.float32)
        + jnp.dot(attn, place_ref[...], preferred_element_type=jnp.float32)
    )
    packed_ref[...] = packed


def _pick_block_b(B, SE, itemsize, *, x_block_bytes=1 << 20, max_block=2048):
    """Largest batch tile that (a) is a multiple of 8 and divides B, (b) moves
    ~1 MiB of x per grid step so the ~0.35 us per-step overhead is amortized,
    and (c) leaves >= 2 grid steps so the 'parallel' batch axis can shard
    across v7x's two TensorCores."""
    if B <= 8 or B % 8 != 0:
        return B                       # tiny / odd batch: single grid step
    target = max(8, min(max_block, x_block_bytes // max(1, SE * itemsize)))
    cap = min(target, B // 2)          # keep >= 2 grid steps for megacore
    cap = max(cap, 8)
    best = 8
    for tb in range(8, cap + 1, 8):
        if B % tb == 0:
            best = tb
    return best


def attention_pallas(x, mask, weight, bias, context, *, block_b=None):
    """x: (B, S, E), mask: (B, S) 0/1, weight: (E, E) PyTorch layout,
    bias/context: (E,). Returns (output (B, E), attention_weights (B, S))."""
    assert x.ndim == 3, "wrapper handles (B, S, E) inputs"
    B, S, E = x.shape
    SE = S * E
    # Packed output width: lane-dense multiple of 128 holding [output | attn].
    P = max(128, ((E + S + 127) // 128) * 128)

    itemsize = x.dtype.itemsize
    if block_b is None:
        block_b = _pick_block_b(B, SE, itemsize)
    assert B % block_b == 0, "batch tile must divide B"
    nb = B // block_b

    f32 = jnp.float32
    inv_norm = 1.0 / math.sqrt(E)

    # Operand prep (wrapper-side, all cheap XLA ops on tiny constants).
    x_flat = x.reshape(B, SE)                                   # free reshape
    mask_i = (mask != 0).astype(jnp.int32)                      # (B, S)

    eye_s = jnp.eye(S, dtype=f32)
    w_bd = jnp.kron(eye_s, weight.T.astype(f32))                # (SE, SE)
    bias_t = jnp.tile(bias.astype(f32), S).reshape(1, SE)       # (1, SE)
    ctx_sel = jnp.kron(eye_s,
                       (context.astype(f32) * inv_norm).reshape(E, 1))  # (SE, S)
    expand = jnp.kron(eye_s, jnp.ones((1, E), f32))             # (S, SE)
    out_sel = jnp.zeros((SE, P), f32).at[:, :E].set(
        jnp.tile(jnp.eye(E, dtype=f32), (S, 1)))                # (SE, P)
    place = jnp.zeros((S, P), f32).at[jnp.arange(S),
                                      E + jnp.arange(S)].set(1.0)  # (S, P)

    in_specs = [
        pl.BlockSpec((block_b, SE), lambda i: (i, 0)),  # x_flat: tiled over batch
        pl.BlockSpec((block_b, S), lambda i: (i, 0)),   # mask:   tiled over batch
        pl.BlockSpec((SE, SE), lambda i: (0, 0)),       # block-diag W^T: resident
        pl.BlockSpec((1, SE), lambda i: (0, 0)),        # tiled bias:     resident
        pl.BlockSpec((SE, S), lambda i: (0, 0)),        # ctx selector:   resident
        pl.BlockSpec((S, SE), lambda i: (0, 0)),        # attn expander:  resident
        pl.BlockSpec((SE, P), lambda i: (0, 0)),        # output selector:resident
        pl.BlockSpec((S, P), lambda i: (0, 0)),         # attn placer:    resident
    ]
    out_specs = pl.BlockSpec((block_b, P), lambda i: (i, 0))    # packed slab

    const_bytes = 4 * (SE * SE + SE + SE * S + S * SE + SE * P + S * P)
    bytes_accessed = (B * SE * itemsize + B * S * 4 + const_bytes + B * P * 4)
    cost = pl.CostEstimate(
        flops=2 * B * (SE * SE + 2 * SE * S + SE * P + S * P) + 4 * B * SE,
        transcendentals=B * (SE + S),                   # tanh + exp
        bytes_accessed=bytes_accessed,
    )

    packed = pl.pallas_call(
        _attention_kernel,
        out_shape=jax.ShapeDtypeStruct((B, P), jnp.float32),
        grid=(nb,),
        in_specs=in_specs,
        out_specs=out_specs,
        compiler_params=pltpu.CompilerParams(
            dimension_semantics=("parallel",),          # shard batch over TCs (v7x)
            vmem_limit_bytes=32 * 1024 * 1024,          # raise v5e's 16 MiB default
        ),
        cost_estimate=cost,
    )(x_flat, mask_i, w_bd, bias_t, ctx_sel, expand, out_sel, place)

    out = packed[:, :E].astype(x.dtype)
    attn = packed[:, E:E + S]
    return out, attn


def attention_ref(x, mask, weight, bias, context):
    """Pure-JAX reference matching the PyTorch forward exactly."""
    E = x.shape[-1]
    hidden = jnp.tanh(jnp.einsum("bse,fe->bsf", x, weight) + bias)
    importance = jnp.sum(hidden * context, axis=-1) / jnp.sqrt(jnp.float32(E))
    importance = jnp.where(mask == 0, -1e9, importance)
    attn = jax.nn.softmax(importance, axis=-1)
    out = jnp.sum(x * attn[..., None], axis=-2)
    return out, attn


if __name__ == "__main__":
    # Small shapes; B=16 exercises the batch grid (block_b=8 -> 2 grid steps,
    # one per TensorCore on v7x).
    B, S, E = 16, 8, 32

    key = jax.random.PRNGKey(0)
    kx, kw, kb, kctx = jax.random.split(key, 4)

    x = jax.random.normal(kx, (B, S, E), dtype=jnp.float32)
    # mask: 1 for valid positions, 0 for padding (variable-length sequences)
    lengths = (jnp.arange(B) % S) + 1
    mask = (jnp.arange(S)[None, :] < lengths[:, None]).astype(jnp.float32)  # (B, S)

    # Parameters mirroring nn.Linear defaults + normal-initialized context.
    bound = 1.0 / math.sqrt(E)
    weight = jax.random.uniform(kw, (E, E), minval=-bound, maxval=bound,
                                dtype=jnp.float32)
    bias = jax.random.uniform(kb, (E,), minval=-bound, maxval=bound,
                              dtype=jnp.float32)
    context = jax.random.normal(kctx, (E,), dtype=jnp.float32)

    out, attn = attention_pallas(x, mask, weight, bias, context)
    jax.block_until_ready((out, attn))

    out_r, attn_r = attention_ref(x, mask, weight, bias, context)
    assert jnp.allclose(out, out_r, atol=2e-3, rtol=2e-3), "output mismatch"
    assert jnp.allclose(attn, attn_r, atol=2e-3, rtol=2e-3), "attention weights mismatch"

    print("KERNEL_OK")
</pallas_src>

<mosaic_0001>
module attributes {stable_mosaic.version = 11 : i64} {
  func.func @_attention_kernel(%arg0: i32, %arg1: memref<8x256xf32, #tpu.memory_space<vmem>>, %arg2: memref<8x8xi32, #tpu.memory_space<vmem>>, %arg3: memref<256x256xf32, #tpu.memory_space<vmem>>, %arg4: memref<1x256xf32, #tpu.memory_space<vmem>>, %arg5: memref<256x8xf32, #tpu.memory_space<vmem>>, %arg6: memref<8x256xf32, #tpu.memory_space<vmem>>, %arg7: memref<256x128xf32, #tpu.memory_space<vmem>>, %arg8: memref<8x128xf32, #tpu.memory_space<vmem>>, %arg9: memref<8x128xf32, #tpu.memory_space<vmem>>) attributes {dimension_semantics = [#tpu.dimension_semantics<parallel>], iteration_bounds = array<i64: 2>, scalar_prefetch = 0 : i64, scratch_operands = 0 : i64, tpu.core_type = #tpu.core_type<tc>, window_params = [{transform_indices = @transform_0, window_bounds = array<i64: 8, 256>}, {transform_indices = @transform_1, window_bounds = array<i64: 8, 8>}, {pipeline_mode = #tpu.pipeline_mode<synchronous>, transform_indices = @transform_2, window_bounds = array<i64: 256, 256>}, {pipeline_mode = #tpu.pipeline_mode<synchronous>, transform_indices = @transform_3, window_bounds = array<i64: 1, 256>}, {pipeline_mode = #tpu.pipeline_mode<synchronous>, transform_indices = @transform_4, window_bounds = array<i64: 256, 8>}, {pipeline_mode = #tpu.pipeline_mode<synchronous>, transform_indices = @transform_5, window_bounds = array<i64: 8, 256>}, {pipeline_mode = #tpu.pipeline_mode<synchronous>, transform_indices = @transform_6, window_bounds = array<i64: 256, 128>}, {pipeline_mode = #tpu.pipeline_mode<synchronous>, transform_indices = @transform_7, window_bounds = array<i64: 8, 128>}, {transform_indices = @transform_8, window_bounds = array<i64: 8, 128>}]} {
    %c0 = arith.constant 0 : index
    %c0_0 = arith.constant 0 : index
    %0 = vector.load %arg1[%c0, %c0_0] : memref<8x256xf32, #tpu.memory_space<vmem>>, vector<8x256xf32>
    %c0_1 = arith.constant 0 : index
    %c0_2 = arith.constant 0 : index
    %1 = vector.load %arg3[%c0_1, %c0_2] : memref<256x256xf32, #tpu.memory_space<vmem>>, vector<256x256xf32>
    %cst = arith.constant dense<0.000000e+00> : vector<8x256xf32>
    %2 = tpu.matmul %0, %1, %cst {dimension_numbers = #tpu.dot_dimension_numbers<[1], [0], [0], [1], [0, 0, 1, 1], [], []>} : vector<8x256xf32>, vector<256x256xf32>, vector<8x256xf32> -> vector<8x256xf32>
    %c0_3 = arith.constant 0 : index
    %c0_4 = arith.constant 0 : index
    %3 = vector.load %arg4[%c0_3, %c0_4] : memref<1x256xf32, #tpu.memory_space<vmem>>, vector<1x256xf32>
    %4 = vector.broadcast %3 : vector<1x256xf32> to vector<8x256xf32>
    %5 = arith.addf %2, %4 : vector<8x256xf32>
    %6 = math.tanh %5 : vector<8x256xf32>
    %c0_5 = arith.constant 0 : index
    %c0_6 = arith.constant 0 : index
    %7 = vector.load %arg5[%c0_5, %c0_6] : memref<256x8xf32, #tpu.memory_space<vmem>>, vector<256x8xf32>
    %cst_7 = arith.constant dense<0.000000e+00> : vector<8x8xf32>
    %8 = tpu.matmul %6, %7, %cst_7 {dimension_numbers = #tpu.dot_dimension_numbers<[1], [0], [0], [1], [0, 0, 1, 1], [], []>} : vector<8x256xf32>, vector<256x8xf32>, vector<8x8xf32> -> vector<8x8xf32>
    %c0_8 = arith.constant 0 : index
    %c0_9 = arith.constant 0 : index
    %9 = vector.load %arg2[%c0_8, %c0_9] : memref<8x8xi32, #tpu.memory_space<vmem>>, vector<8x8xi32>
    %c0_i32 = arith.constant 0 : i32
    %10 = vector.broadcast %c0_i32 : i32 to vector<8x8xi32>
    %11 = arith.cmpi eq, %9, %10 : vector<8x8xi32>
    %cst_10 = arith.constant -1.000000e+09 : f32
    %12 = vector.broadcast %cst_10 : f32 to vector<8x8xf32>
    %13 = arith.select %11, %12, %8 : vector<8x8xi1>, vector<8x8xf32>
    %cst_11 = arith.constant dense<0xFF800000> : vector<8xf32>
    %14 = vector.multi_reduction <maximumf>, %13, %cst_11 [1] : vector<8x8xf32> to vector<8xf32>
    %15 = vector.shape_cast %14 : vector<8xf32> to vector<8x1xf32>
    %16 = vector.broadcast %15 : vector<8x1xf32> to vector<8x8xf32>
    %17 = arith.subf %13, %16 : vector<8x8xf32>
    %18 = math.exp %17 : vector<8x8xf32>
    %cst_12 = arith.constant dense<0.000000e+00> : vector<8xf32>
    %19 = vector.multi_reduction <add>, %18, %cst_12 [1] : vector<8x8xf32> to vector<8xf32>
    %20 = vector.shape_cast %19 : vector<8xf32> to vector<8x1xf32>
    %21 = vector.broadcast %20 : vector<8x1xf32> to vector<8x8xf32>
    %22 = arith.divf %18, %21 : vector<8x8xf32>
    %c0_13 = arith.constant 0 : index
    %c0_14 = arith.constant 0 : index
    %23 = vector.load %arg6[%c0_13, %c0_14] : memref<8x256xf32, #tpu.memory_space<vmem>>, vector<8x256xf32>
    %cst_15 = arith.constant dense<0.000000e+00> : vector<8x256xf32>
    %24 = tpu.matmul %22, %23, %cst_15 {dimension_numbers = #tpu.dot_dimension_numbers<[1], [0], [0], [1], [0, 0, 1, 1], [], []>} : vector<8x8xf32>, vector<8x256xf32>, vector<8x256xf32> -> vector<8x256xf32>
    %25 = arith.mulf %0, %24 : vector<8x256xf32>
    %c0_16 = arith.constant 0 : index
    %c0_17 = arith.constant 0 : index
    %26 = vector.load %arg7[%c0_16, %c0_17] : memref<256x128xf32, #tpu.memory_space<vmem>>, vector<256x128xf32>
    %cst_18 = arith.constant dense<0.000000e+00> : vector<8x128xf32>
    %27 = tpu.matmul %25, %26, %cst_18 {dimension_numbers = #tpu.dot_dimension_numbers<[1], [0], [0], [1], [0, 0, 1, 1], [], []>} : vector<8x256xf32>, vector<256x128xf32>, vector<8x128xf32> -> vector<8x128xf32>
    %c0_19 = arith.constant 0 : index
    %c0_20 = arith.constant 0 : index
    %28 = vector.load %arg8[%c0_19, %c0_20] : memref<8x128xf32, #tpu.memory_space<vmem>>, vector<8x128xf32>
    %cst_21 = arith.constant dense<0.000000e+00> : vector<8x128xf32>
    %29 = tpu.matmul %22, %28, %cst_21 {dimension_numbers = #tpu.dot_dimension_numbers<[1], [0], [0], [1], [0, 0, 1, 1], [], []>} : vector<8x8xf32>, vector<8x128xf32>, vector<8x128xf32> -> vector<8x128xf32>
    %30 = arith.addf %27, %29 : vector<8x128xf32>
    %c0_22 = arith.constant 0 : index
    %c0_23 = arith.constant 0 : index
    %31 = vector.load %arg9[%c0_22, %c0_23] : memref<8x128xf32, #tpu.memory_space<vmem>>, vector<8x128xf32>
    tpu.vector_store %arg9[%c0_22, %c0_23], %30 {strides = array<i32>} : memref<8x128xf32, #tpu.memory_space<vmem>>, vector<8x128xf32>,
    return
  }
  func.func @transform_0(%arg0: i32) -> (i32, i32) {
    %c0_i32 = arith.constant 0 : i32
    %c0_i32_0 = arith.constant 0 : i32
    return %arg0, %c0_i32 : i32, i32
  }
  func.func @transform_1(%arg0: i32) -> (i32, i32) {
    %c0_i32 = arith.constant 0 : i32
    %c0_i32_0 = arith.constant 0 : i32
    return %arg0, %c0_i32 : i32, i32
  }
  func.func @transform_2(%arg0: i32) -> (i32, i32) {
    %c0_i32 = arith.constant 0 : i32
    %c0_i32_0 = arith.constant 0 : i32
    %c0_i32_1 = arith.constant 0 : i32
    return %c0_i32, %c0_i32_0 : i32, i32
  }
  func.func @transform_3(%arg0: i32) -> (i32, i32) {
    %c0_i32 = arith.constant 0 : i32
    %c0_i32_0 = arith.constant 0 : i32
    %c0_i32_1 = arith.constant 0 : i32
    return %c0_i32, %c0_i32_0 : i32, i32
  }
  func.func @transform_4(%arg0: i32) -> (i32, i32) {
    %c0_i32 = arith.constant 0 : i32
    %c0_i32_0 = arith.constant 0 : i32
    %c0_i32_1 = arith.constant 0 : i32
    return %c0_i32, %c0_i32_0 : i32, i32
  }
  func.func @transform_5(%arg0: i32) -> (i32, i32) {
    %c0_i32 = arith.constant 0 : i32
    %c0_i32_0 = arith.constant 0 : i32
    %c0_i32_1 = arith.constant 0 : i32
    return %c0_i32, %c0_i32_0 : i32, i32
  }
  func.func @transform_6(%arg0: i32) -> (i32, i32) {
    %c0_i32 = arith.constant 0 : i32
    %c0_i32_0 = arith.constant 0 : i32
    %c0_i32_1 = arith.constant 0 : i32
    return %c0_i32, %c0_i32_0 : i32, i32
  }
  func.func @transform_7(%arg0: i32) -> (i32, i32) {
    %c0_i32 = arith.constant 0 : i32
    %c0_i32_0 = arith.constant 0 : i32
    %c0_i32_1 = arith.constant 0 : i32
    return %c0_i32, %c0_i32_0 : i32, i32
  }
  func.func @transform_8(%arg0: i32) -> (i32, i32) {
    %c0_i32 = arith.constant 0 : i32
    %c0_i32_0 = arith.constant 0 : i32
    return %arg0, %c0_i32 : i32, i32
  }
}

</mosaic_0001>

<llo_original>
// kernel: tpu_custom_call.1
$region0: #{tpu_custom_call.1}
  #allocation0 [shape = 'u32[]', space=smem, size = 0x4, offset = 0x4, fixed_abs, tag = 'smem constant byte address 0x4 - core index']
  #allocation1 [shape = 'u32[144,128]{1,0:T(1,128)}', space=vmem, size = 0x12000, scoped, tag = 'internal scratch']
  %s0 = inlined_call_operand.vmem [shape: f32[16,256], index: 0, kind: input, shape index: {}]
  %s1 = inlined_call_operand.vmem [shape: s32[16,8], index: 1, kind: input, shape index: {}]
  %s2 = inlined_call_operand.hbm [shape: f32[256,256], index: 2, kind: input, shape index: {}]
  %s3 = inlined_call_operand.vmem [shape: f32[1,256], index: 3, kind: input, shape index: {}]
  %s4 = inlined_call_operand.vmem [shape: f32[256,8], index: 4, kind: input, shape index: {}]
  %s5 = inlined_call_operand.vmem [shape: f32[8,256], index: 5, kind: input, shape index: {}]
  %s6 = inlined_call_operand.vmem [shape: f32[256,128], index: 6, kind: input, shape index: {}]
  %s7 = inlined_call_operand.vmem [shape: f32[8,128], index: 7, kind: input, shape index: {}]
  %s8 = inlined_call_operand.hbm [shape: f32[16,128], index: 8, kind: output, shape index: {}]
  %s9 = sld [smem:[#allocation0]]
  $region69: #{tpu_custom_call.1} parent=0
    _
  %s11 = ssub.s32 1, %s9
  %s12 = scalar_select 0, %s11, %s9
  $region1: #{tpu_custom_call.1} parent=0
    #allocation2 [shape = 'u8[262144]{0}', space=vmem, size = 0x40000, scoped, tag = 'input window, operand 2, single buffered']
    #allocation3 [shape = 's32[2]{0}', space=sflag, size = 0x8, scoped, tag = 'scoped memory for tpu_custom_call.1']
    #allocation4 [shape = 's32[2]{0}', space=sflag, size = 0x8, scoped, tag = 'scoped memory for tpu_custom_call.1']
    #allocation5 [shape = 'u8[8192]{0}', space=vmem, size = 0x2000, scoped, tag = 'output window, operand 0']
    %13 = vsyncpa [#allocation3], 0
    %14 = vsyncpa [#allocation4], 0
    %s15 = scalar_lea.sflag [#allocation4], 1
    %16 = vsyncpa %s15, 0
    loop: start=0, step=1, limit=4
    $region2: #{tpu_custom_call.1} parent=1 // loop_pre_header
      _
    $region3: #{tpu_custom_call.1} parent=1 // loop_header
      %s18 = sphi 0, %s22
      %p19 = scmp.ge.s32.totalorder %s18, 4
      %s28 = sphi 0, %s30
      %s31 = sphi 0, %s28
      %s32 = sphi 0, %s31
      %s48 = sphi 0, %s32
      %s54 = sphi 0, %s56
      %s57 = sphi 0, %s54
      %s58 = sphi 0, %s57
      %s74 = sphi 0, %s58
      %s78 = sphi 0, %s78
      %s80 = sphi 0, %s78
      %s81 = sphi 0, %s80
      %s95 = sphi 0, %s81
      %s99 = sphi 0, %s99
      %s101 = sphi 0, %s99
      %s102 = sphi 0, %s101
      %s116 = sphi 0, %s102
      %s120 = sphi 0, %s120
      %s122 = sphi 0, %s120
      %s123 = sphi 0, %s122
      %s137 = sphi 0, %s123
      %s141 = sphi 0, %s141
      %s143 = sphi 0, %s141
      %s144 = sphi 0, %s143
      %s158 = sphi 0, %s144
      %s162 = sphi 0, %s162
      %s164 = sphi 0, %s162
      %s165 = sphi 0, %s164
      %s179 = sphi 0, %s165
      %s183 = sphi 0, %s183
      %s185 = sphi 0, %s183
      %s186 = sphi 0, %s185
      %s200 = sphi 0, %s186
      %s206 = sphi 0, %s208
      %s209 = sphi 0, %s206
      %s210 = sphi 0, %s209
      %s226 = sphi 0, %s210
    $region4: #{tpu_custom_call.1} parent=1 // loop_header_branch
      %21 = sbr.rel (%p19) target = $region8
    $region5: #{tpu_custom_call.1} parent=1 // loop_body
      %s23 = ssub.s32 %s18, 1
      %s24 = ssub.s32 %s18, 2
      %s25 = sadd.s32 %s18, 1
      %s26 = ssub.s32 %s18, %s25
      %p27 = scmp.eq.s32.totalorder %s26, 0
      %s29 = sadd.s32 %s28, 1
      %s30 = scalar_select %p27, %s28, %s29
      %p33 = pneg %p27
      %p34 = scmp.eq.s32.totalorder %s18, 1
      %p35 = por %p33, %p34
      %p36 = scmp.ne.s32.totalorder %s28, %s31
      %p37 = scmp.eq.s32.totalorder %s18, 0
      %p38 = por %p36, %p37
      %p39 = scmp.ne.s32.totalorder %s28, %s31
      %p40 = scmp.eq.s32.totalorder %s23, 1
      %p41 = por %p39, %p40
      %p42 = scmp.ne.s32.totalorder %s31, %s32
      %p43 = scmp.eq.s32.totalorder %s23, 0
      %p44 = por %p42, %p43
      %p45 = scmp.ne.s32.totalorder %s31, %s32
      %p46 = scmp.eq.s32.totalorder %s24, 1
      %p47 = por %p45, %p46
      %p49 = scmp.ne.s32.totalorder %s32, %s48
      %p50 = scmp.eq.s32.totalorder %s24, 0
      %p51 = por %p49, %p50
      %s52 = ssub.s32 %s18, %s25
      %p53 = scmp.eq.s32.totalorder %s52, 0
      %s55 = sadd.s32 %s54, 1
      %s56 = scalar_select %p53, %s54, %s55
      %p59 = pneg %p53
      %p60 = scmp.eq.s32.totalorder %s18, 1
      %p61 = por %p59, %p60
      %p62 = scmp.ne.s32.totalorder %s54, %s57
      %p63 = scmp.eq.s32.totalorder %s18, 0
      %p64 = por %p62, %p63
      %p65 = scmp.ne.s32.totalorder %s54, %s57
      %p66 = scmp.eq.s32.totalorder %s23, 1
      %p67 = por %p65, %p66
      %p68 = scmp.ne.s32.totalorder %s57, %s58
      %p69 = scmp.eq.s32.totalorder %s23, 0
      %p70 = por %p68, %p69
      %p71 = scmp.ne.s32.totalorder %s57, %s58
      %p72 = scmp.eq.s32.totalorder %s24, 1
      %p73 = por %p71, %p72
      %p75 = scmp.ne.s32.totalorder %s58, %s74
      %p76 = scmp.eq.s32.totalorder %s24, 0
      %p77 = por %p75, %p76
      %s79 = sadd.s32 %s78, 1
      %p82 = scmp.eq.s32.totalorder %s18, 1
      %p83 = scmp.ne.s32.totalorder %s78, %s80
      %p84 = scmp.eq.s32.totalorder %s18, 0
      %p85 = por %p83, %p84
      %p86 = scmp.ne.s32.totalorder %s78, %s80
      %p87 = scmp.eq.s32.totalorder %s23, 1
      %p88 = por %p86, %p87
      %p89 = scmp.ne.s32.totalorder %s80, %s81
      %p90 = scmp.eq.s32.totalorder %s23, 0
      %p91 = por %p89, %p90
      %p92 = scmp.ne.s32.totalorder %s80, %s81
      %p93 = scmp.eq.s32.totalorder %s24, 1
      %p94 = por %p92, %p93
      %p96 = scmp.ne.s32.totalorder %s81, %s95
      %p97 = scmp.eq.s32.totalorder %s24, 0
      %p98 = por %p96, %p97
      %s100 = sadd.s32 %s99, 1
      %p103 = scmp.eq.s32.totalorder %s18, 1
      %p104 = scmp.ne.s32.totalorder %s99, %s101
      %p105 = scmp.eq.s32.totalorder %s18, 0
      %p106 = por %p104, %p105
      %p107 = scmp.ne.s32.totalorder %s99, %s101
      %p108 = scmp.eq.s32.totalorder %s23, 1
      %p109 = por %p107, %p108
      %p110 = scmp.ne.s32.totalorder %s101, %s102
      %p111 = scmp.eq.s32.totalorder %s23, 0
      %p112 = por %p110, %p111
      %p113 = scmp.ne.s32.totalorder %s101, %s102
      %p114 = scmp.eq.s32.totalorder %s24, 1
      %p115 = por %p113, %p114
      %p117 = scmp.ne.s32.totalorder %s102, %s116
      %p118 = scmp.eq.s32.totalorder %s24, 0
      %p119 = por %p117, %p118
      %s121 = sadd.s32 %s120, 1
      %p124 = scmp.eq.s32.totalorder %s18, 1
      %p125 = scmp.ne.s32.totalorder %s120, %s122
      %p126 = scmp.eq.s32.totalorder %s18, 0
      %p127 = por %p125, %p126
      %p128 = scmp.ne.s32.totalorder %s120, %s122
      %p129 = scmp.eq.s32.totalorder %s23, 1
      %p130 = por %p128, %p129
      %p131 = scmp.ne.s32.totalorder %s122, %s123
      %p132 = scmp.eq.s32.totalorder %s23, 0
      %p133 = por %p131, %p132
      %p134 = scmp.ne.s32.totalorder %s122, %s123
      %p135 = scmp.eq.s32.totalorder %s24, 1
      %p136 = por %p134, %p135
      %p138 = scmp.ne.s32.totalorder %s123, %s137
      %p139 = scmp.eq.s32.totalorder %s24, 0
      %p140 = por %p138, %p139
      %s142 = sadd.s32 %s141, 1
      %p145 = scmp.eq.s32.totalorder %s18, 1
      %p146 = scmp.ne.s32.totalorder %s141, %s143
      %p147 = scmp.eq.s32.totalorder %s18, 0
      %p148 = por %p146, %p147
      %p149 = scmp.ne.s32.totalorder %s141, %s143
      %p150 = scmp.eq.s32.totalorder %s23, 1
      %p151 = por %p149, %p150
      %p152 = scmp.ne.s32.totalorder %s143, %s144
      %p153 = scmp.eq.s32.totalorder %s23, 0
      %p154 = por %p152, %p153
      %p155 = scmp.ne.s32.totalorder %s143, %s144
      %p156 = scmp.eq.s32.totalorder %s24, 1
      %p157 = por %p155, %p156
      %p159 = scmp.ne.s32.totalorder %s144, %s158
      %p160 = scmp.eq.s32.totalorder %s24, 0
      %p161 = por %p159, %p160
      %s163 = sadd.s32 %s162, 1
      %p166 = scmp.eq.s32.totalorder %s18, 1
      %p167 = scmp.ne.s32.totalorder %s162, %s164
      %p168 = scmp.eq.s32.totalorder %s18, 0
      %p169 = por %p167, %p168
      %p170 = scmp.ne.s32.totalorder %s162, %s164
      %p171 = scmp.eq.s32.totalorder %s23, 1
      %p172 = por %p170, %p171
      %p173 = scmp.ne.s32.totalorder %s164, %s165
      %p174 = scmp.eq.s32.totalorder %s23, 0
      %p175 = por %p173, %p174
      %p176 = scmp.ne.s32.totalorder %s164, %s165
      %p177 = scmp.eq.s32.totalorder %s24, 1
      %p178 = por %p176, %p177
      %p180 = scmp.ne.s32.totalorder %s165, %s179
      %p181 = scmp.eq.s32.totalorder %s24, 0
      %p182 = por %p180, %p181
      %s184 = sadd.s32 %s183, 1
      %p187 = scmp.eq.s32.totalorder %s18, 1
      %p188 = scmp.ne.s32.totalorder %s183, %s185
      %p189 = scmp.eq.s32.totalorder %s18, 0
      %p190 = por %p188, %p189
      %p191 = scmp.ne.s32.totalorder %s183, %s185
      %p192 = scmp.eq.s32.totalorder %s23, 1
      %p193 = por %p191, %p192
      %p194 = scmp.ne.s32.totalorder %s185, %s186
      %p195 = scmp.eq.s32.totalorder %s23, 0
      %p196 = por %p194, %p195
      %p197 = scmp.ne.s32.totalorder %s185, %s186
      %p198 = scmp.eq.s32.totalorder %s24, 1
      %p199 = por %p197, %p198
      %p201 = scmp.ne.s32.totalorder %s186, %s200
      %p202 = scmp.eq.s32.totalorder %s24, 0
      %p203 = por %p201, %p202
      %s204 = ssub.s32 %s18, %s25
      %p205 = scmp.eq.s32.totalorder %s204, 0
      %s207 = sadd.s32 %s206, 1
      %s208 = scalar_select %p205, %s206, %s207
      %p211 = pneg %p205
      %p212 = scmp.eq.s32.totalorder %s18, 1
      %p213 = por %p211, %p212
      %p214 = scmp.ne.s32.totalorder %s206, %s209
      %p215 = scmp.eq.s32.totalorder %s18, 0
      %p216 = por %p214, %p215
      %p217 = scmp.ne.s32.totalorder %s206, %s209
      %p218 = scmp.eq.s32.totalorder %s23, 1
      %p219 = por %p217, %p218
      %p220 = scmp.ne.s32.totalorder %s209, %s210
      %p221 = scmp.eq.s32.totalorder %s23, 0
      %p222 = por %p220, %p221
      %p223 = scmp.ne.s32.totalorder %s209, %s210
      %p224 = scmp.eq.s32.totalorder %s24, 1
      %p225 = por %p223, %p224
      %p227 = scmp.ne.s32.totalorder %s210, %s226
      %p228 = scmp.eq.s32.totalorder %s24, 0
      %p229 = por %p227, %p228
      %p230 = scmp.le.s32.totalorder 1, %s18
      %p231 = scmp.lt.s32.totalorder %s18, 3
      %p232 = pnand %p230, %p231
      %p233 = pneg %p232
      // Predicated region
      $region9: #{tpu_custom_call.1} parent=5 // pred_check
        _
      $region10: #{tpu_custom_call.1} parent=5 // pred_check_branch
        %235 = sbr.rel (%p232) target = $region12
      $region11: #{tpu_custom_call.1} parent=5 // pred_region
        %s236 = ssub.s32 %s18, 1
        // Predicated region
        $region13: #{tpu_custom_call.1} parent=11 // pred_check
          %p237 = pneg %p91
        $region14: #{tpu_custom_call.1} parent=11 // pred_check_branch
          %239 = sbr.rel (%p237) target = $region16
        $region15: #{tpu_custom_call.1} parent=11 // pred_region
          %s241 = ssub.s32 8192, 8192
          %242 = vsyncadd [#allocation3], %s241
          %s243 = sshll.u32 [#allocation2], 4
          %s244 = int_to_ptr.vmem [resolvable:$true] %s243
          %249 = dma.hbm_to_vmem [thread:$0]  %s2, 8192, %s244, [#allocation3], 256, 256, 16
        $region16: #{tpu_custom_call.1} parent=11 // pred_fallthru
          _
        // Predicated region
        $region17: #{tpu_custom_call.1} parent=11 // pred_check
          %p250 = pneg %p112
        $region18: #{tpu_custom_call.1} parent=11 // pred_check_branch
          %252 = sbr.rel (%p250) target = $region20
        $region19: #{tpu_custom_call.1} parent=11 // pred_region
          _
        $region20: #{tpu_custom_call.1} parent=11 // pred_fallthru
          _
        // Predicated region
        $region21: #{tpu_custom_call.1} parent=11 // pred_check
          %p253 = pneg %p133
        $region22: #{tpu_custom_call.1} parent=11 // pred_check_branch
          %255 = sbr.rel (%p253) target = $region24
        $region23: #{tpu_custom_call.1} parent=11 // pred_region
          _
        $region24: #{tpu_custom_call.1} parent=11 // pred_fallthru
          _
        // Predicated region
        $region25: #{tpu_custom_call.1} parent=11 // pred_check
          %p256 = pneg %p154
        $region26: #{tpu_custom_call.1} parent=11 // pred_check_branch
          %258 = sbr.rel (%p256) target = $region28
        $region27: #{tpu_custom_call.1} parent=11 // pred_region
          _
        $region28: #{tpu_custom_call.1} parent=11 // pred_fallthru
          _
        // Predicated region
        $region29: #{tpu_custom_call.1} parent=11 // pred_check
          %p259 = pneg %p175
        $region30: #{tpu_custom_call.1} parent=11 // pred_check_branch
          %261 = sbr.rel (%p259) target = $region32
        $region31: #{tpu_custom_call.1} parent=11 // pred_region
          _
        $region32: #{tpu_custom_call.1} parent=11 // pred_fallthru
          _
        // Predicated region
        $region33: #{tpu_custom_call.1} parent=11 // pred_check
          %p262 = pneg %p196
        $region34: #{tpu_custom_call.1} parent=11 // pred_check_branch
          %264 = sbr.rel (%p262) target = $region36
        $region35: #{tpu_custom_call.1} parent=11 // pred_region
          _
        $region36: #{tpu_custom_call.1} parent=11 // pred_fallthru
          _
      $region12: #{tpu_custom_call.1} parent=5 // pred_fallthru
        _
      %p265 = scmp.lt.s32.totalorder %s18, 2
      // Predicated region
      $region37: #{tpu_custom_call.1} parent=5 // pred_check
        %p266 = pneg %p265
      $region38: #{tpu_custom_call.1} parent=5 // pred_check_branch
        %268 = sbr.rel (%p266) target = $region40
      $region39: #{tpu_custom_call.1} parent=5 // pred_region
        // Predicated region
        $region41: #{tpu_custom_call.1} parent=39 // pred_check
          %p269 = pneg %p38
        $region42: #{tpu_custom_call.1} parent=39 // pred_check_branch
          %271 = sbr.rel (%p269) target = $region44
        $region43: #{tpu_custom_call.1} parent=39 // pred_region
          %p272 = scmp.lt.s32.totalorder %s18, 1
          %s273 = scalar_select %p272, %s18, 1
          %s274 = smul.addr %s273, 2
          %s275 = smul.addr %s274, 8
          %s276 = scalar_lea.vmem %s0, %s275
        $region44: #{tpu_custom_call.1} parent=39 // pred_fallthru
          _
        // Predicated region
        $region45: #{tpu_custom_call.1} parent=39 // pred_check
          %p277 = pneg %p64
        $region46: #{tpu_custom_call.1} parent=39 // pred_check_branch
          %279 = sbr.rel (%p277) target = $region48
        $region47: #{tpu_custom_call.1} parent=39 // pred_region
          %p280 = scmp.lt.s32.totalorder %s18, 1
          %s281 = scalar_select %p280, %s18, 1
          %s282 = smul.addr %s281, 8
          %s283 = scalar_lea.vmem %s1, %s282
        $region48: #{tpu_custom_call.1} parent=39 // pred_fallthru
          _
      $region40: #{tpu_custom_call.1} parent=5 // pred_fallthru
        _
      %p284 = scmp.le.s32.totalorder 1, %s18
      %p285 = scmp.lt.s32.totalorder %s18, 3
      %p286 = pnand %p284, %p285
      %p287 = pneg %p286
      // Predicated region
      $region49: #{tpu_custom_call.1} parent=5 // pred_check
        _
      $region50: #{tpu_custom_call.1} parent=5 // pred_check_branch
        %289 = sbr.rel (%p286) target = $region52
      $region51: #{tpu_custom_call.1} parent=5 // pred_region
        %s290 = ssub.s32 %s18, 1
        // Predicated region
        $region53: #{tpu_custom_call.1} parent=51 // pred_check
          %p291 = pneg %p91
        $region54: #{tpu_custom_call.1} parent=51 // pred_check_branch
          %293 = sbr.rel (%p291) target = $region56
        $region55: #{tpu_custom_call.1} parent=51 // pred_region
          %294 = dma.done [#allocation3], 8192
        $region56: #{tpu_custom_call.1} parent=51 // pred_fallthru
          _
        %p295 = scmp.lt.s32.totalorder %s23, 1
        %s296 = scalar_select %p295, %s23, 1
        %s297 = smul.addr %s296, 2
        %s298 = smul.addr %s297, 8
        %s299 = scalar_lea.vmem %s0, %s298
        %p300 = pneg %p44
        %p301 = pneg %p41
        %p302 = scmp.lt.s32.totalorder %s23, 1
        %s303 = scalar_select %p302, %s23, 1
        %s304 = smul.addr %s303, 8
        %s305 = scalar_lea.vmem %s1, %s304
        %p306 = pneg %p70
        %p307 = pneg %p67
        %p308 = pneg %p91
        %p309 = pneg %p88
        %p310 = pneg %p112
        %p311 = pneg %p109
        %p312 = pneg %p133
        %p313 = pneg %p130
        %p314 = pneg %p154
        %p315 = pneg %p151
        %p316 = pneg %p175
        %p317 = pneg %p172
        %p318 = pneg %p196
        %p319 = pneg %p193
        %p320 = pneg %p222
        %p321 = pneg %p219
        %s322 = sand.u32 %s209, 1
        %s323 = scalar_lea.sflag [#allocation4], %s322
        %s324 = sand.u32 %s209, 1
        %s325 = smul.addr %s324, 8
        %s326 = scalar_lea.vmem [#allocation5], %s325
        %p327 = scmp.lt.s32.totalorder %s23, 1
        %s328 = scalar_select %p327, %s23, 1
        %s329 = smul.addr %s328, 2
        %s330 = smul.addr %s329, 8
        %s331 = scalar_lea.vmem %s0, %s330
        %p332 = scmp.lt.s32.totalorder %s23, 1
        %s333 = scalar_select %p332, %s23, 1
        %s334 = smul.addr %s333, 8
        %s335 = scalar_lea.vmem %s1, %s334
        %v336 = vld [vmem:[%s331] sm:$0xff]
        %v337 = vld [vmem:[%s331 + $0x8] sm:$0xff]
        %v338 = vld [vmem:[#allocation2] sm:$0xff]
        %v339 = vld [vmem:[#allocation2 + $0x8] sm:$0xff]
        %v340 = vld [vmem:[#allocation2 + $0x10] sm:$0xff]
        %v341 = vld [vmem:[#allocation2 + $0x18] sm:$0xff]
        %v342 = vld [vmem:[#allocation2 + $0x20] sm:$0xff]
        %v343 = vld [vmem:[#allocation2 + $0x28] sm:$0xff]
        %v344 = vld [vmem:[#allocation2 + $0x30] sm:$0xff]
        %v345 = vld [vmem:[#allocation2 + $0x38] sm:$0xff]
        %v346 = vld [vmem:[#allocation2 + $0x40] sm:$0xff]
        %v347 = vld [vmem:[#allocation2 + $0x48] sm:$0xff]
        %v348 = vld [vmem:[#allocation2 + $0x50] sm:$0xff]
        %v349 = vld [vmem:[#allocation2 + $0x58] sm:$0xff]
        %v350 = vld [vmem:[#allocation2 + $0x60] sm:$0xff]
        %v351 = vld [vmem:[#allocation2 + $0x68] sm:$0xff]
        %v352 = vld [vmem:[#allocation2 + $0x70] sm:$0xff]
        %v353 = vld [vmem:[#allocation2 + $0x78] sm:$0xff]
        %v354 = vld [vmem:[#allocation2 + $0x80] sm:$0xff]
        %v355 = vld [vmem:[#allocation2 + $0x88] sm:$0xff]
        %v356 = vld [vmem:[#allocation2 + $0x90] sm:$0xff]
        %v357 = vld [vmem:[#allocation2 + $0x98] sm:$0xff]
        %v358 = vld [vmem:[#allocation2 + $0xa0] sm:$0xff]
        %v359 = vld [vmem:[#allocation2 + $0xa8] sm:$0xff]
        %v360 = vld [vmem:[#allocation2 + $0xb0] sm:$0xff]
        %v361 = vld [vmem:[#allocation2 + $0xb8] sm:$0xff]
        %v362 = vld [vmem:[#allocation2 + $0xc0] sm:$0xff]
        %v363 = vld [vmem:[#allocation2 + $0xc8] sm:$0xff]
        %v364 = vld [vmem:[#allocation2 + $0xd0] sm:$0xff]
        %v365 = vld [vmem:[#allocation2 + $0xd8] sm:$0xff]
        %v366 = vld [vmem:[#allocation2 + $0xe0] sm:$0xff]
        %v367 = vld [vmem:[#allocation2 + $0xe8] sm:$0xff]
        %v368 = vld [vmem:[#allocation2 + $0xf0] sm:$0xff]
        %v369 = vld [vmem:[#allocation2 + $0xf8] sm:$0xff]
        %v370 = vld [vmem:[#allocation2 + $0x100] sm:$0xff]
        %v371 = vld [vmem:[#allocation2 + $0x108] sm:$0xff]
        %v372 = vld [vmem:[#allocation2 + $0x110] sm:$0xff]
        %v373 = vld [vmem:[#allocation2 + $0x118] sm:$0xff]
        %v374 = vld [vmem:[#allocation2 + $0x120] sm:$0xff]
        %v375 = vld [vmem:[#allocation2 + $0x128] sm:$0xff]
        %v376 = vld [vmem:[#allocation2 + $0x130] sm:$0xff]
        %v377 = vld [vmem:[#allocation2 + $0x138] sm:$0xff]
        %v378 = vld [vmem:[#allocation2 + $0x140] sm:$0xff]
        %v379 = vld [vmem:[#allocation2 + $0x148] sm:$0xff]
        %v380 = vld [vmem:[#allocation2 + $0x150] sm:$0xff]
        %v381 = vld [vmem:[#allocation2 + $0x158] sm:$0xff]
        %v382 = vld [vmem:[#allocation2 + $0x160] sm:$0xff]
        %v383 = vld [vmem:[#allocation2 + $0x168] sm:$0xff]
        %v384 = vld [vmem:[#allocation2 + $0x170] sm:$0xff]
        %v385 = vld [vmem:[#allocation2 + $0x178] sm:$0xff]
        %v386 = vld [vmem:[#allocation2 + $0x180] sm:$0xff]
        %v387 = vld [vmem:[#allocation2 + $0x188] sm:$0xff]
        %v388 = vld [vmem:[#allocation2 + $0x190] sm:$0xff]
        %v389 = vld [vmem:[#allocation2 + $0x198] sm:$0xff]
        %v390 = vld [vmem:[#allocation2 + $0x1a0] sm:$0xff]
        %v391 = vld [vmem:[#allocation2 + $0x1a8] sm:$0xff]
        %v392 = vld [vmem:[#allocation2 + $0x1b0] sm:$0xff]
        %v393 = vld [vmem:[#allocation2 + $0x1b8] sm:$0xff]
        %v394 = vld [vmem:[#allocation2 + $0x1c0] sm:$0xff]
        %v395 = vld [vmem:[#allocation2 + $0x1c8] sm:$0xff]
        %v396 = vld [vmem:[#allocation2 + $0x1d0] sm:$0xff]
        %v397 = vld [vmem:[#allocation2 + $0x1d8] sm:$0xff]
        %v398 = vld [vmem:[#allocation2 + $0x1e0] sm:$0xff]
        %v399 = vld [vmem:[#allocation2 + $0x1e8] sm:$0xff]
        %v400 = vld [vmem:[#allocation2 + $0x1f0] sm:$0xff]
        %v401 = vld [vmem:[#allocation2 + $0x1f8] sm:$0xff]
        %v402 = vld [vmem:[%s3] sm:$0x3]
        %v404 = vlaneseq
        %v405 = vshrl.u32 %v404, 7
        %v406 = vsub.s32 0, %v405
        %v407 = vrot.slane %v402, %v406
        %v408 = vlaneseq
        %v409 = vshrl.u32 %v408, 7
        %v410 = vsub.s32 1, %v409
        %v411 = vrot.slane %v402, %v410
        %414 = vmatprep.subr.mxu0 %v339
        %415 = vmatpush1.msra.mxu0 %v338
        %416 = vmatprep.subr.mxu0 %v341
        %417 = vmatpush1.msra.mxu0 %v340
        %418 = vmatprep.subr.mxu0 %v343
        %419 = vmatpush1.msra.mxu0 %v342
        %420 = vmatprep.subr.mxu0 %v345
        %421 = vmatpush1.msra.mxu0 %v344
        %422 = vmatprep.subr.mxu0 %v347
        %423 = vmatpush1.msra.mxu0 %v346
        %424 = vmatprep.subr.mxu0 %v349
        %425 = vmatpush1.msra.mxu0 %v348
        %426 = vmatprep.subr.mxu0 %v351
        %427 = vmatpush1.msra.mxu0 %v350
        %428 = vmatprep.subr.mxu0 %v353
        %429 = vmatpush1.msra.mxu0 %v352
        %430 = vmatprep.subr.mxu0 %v355
        %431 = vmatpush1.msra.mxu0 %v354
        %432 = vmatprep.subr.mxu0 %v357
        %433 = vmatpush1.msra.mxu0 %v356
        %434 = vmatprep.subr.mxu0 %v359
        %435 = vmatpush1.msra.mxu0 %v358
        %436 = vmatprep.subr.mxu0 %v361
        %437 = vmatpush1.msra.mxu0 %v360
        %438 = vmatprep.subr.mxu0 %v363
        %439 = vmatpush1.msra.mxu0 %v362
        %440 = vmatprep.subr.mxu0 %v365
        %441 = vmatpush1.msra.mxu0 %v364
        %442 = vmatprep.subr.mxu0 %v367
        %443 = vmatpush1.msra.mxu0 %v366
        %444 = vmatprep.subr.mxu0 %v369
        %445 = vmatpush1.msra.mxu0 %v368
        %446 = vmatprep.subr.mxu0 %v371
        %447 = vmatpush1.msra.mxu0 %v370
        %448 = vmatprep.subr.mxu0 %v373
        %449 = vmatpush1.msra.mxu0 %v372
        %450 = vmatprep.subr.mxu0 %v375
        %451 = vmatpush1.msra.mxu0 %v374
        %452 = vmatprep.subr.mxu0 %v377
        %453 = vmatpush1.msra.mxu0 %v376
        %454 = vmatprep.subr.mxu0 %v379
        %455 = vmatpush1.msra.mxu0 %v378
        %456 = vmatprep.subr.mxu0 %v381
        %457 = vmatpush1.msra.mxu0 %v380
        %458 = vmatprep.subr.mxu0 %v383
        %459 = vmatpush1.msra.mxu0 %v382
        %460 = vmatprep.subr.mxu0 %v385
        %461 = vmatpush1.msra.mxu0 %v384
        %462 = vmatprep.subr.mxu0 %v387
        %463 = vmatpush1.msra.mxu0 %v386
        %464 = vmatprep.subr.mxu0 %v389
        %465 = vmatpush1.msra.mxu0 %v388
        %466 = vmatprep.subr.mxu0 %v391
        %467 = vmatpush1.msra.mxu0 %v390
        %468 = vmatprep.subr.mxu0 %v393
        %469 = vmatpush1.msra.mxu0 %v392
        %470 = vmatprep.subr.mxu0 %v395
        %471 = vmatpush1.msra.mxu0 %v394
        %472 = vmatprep.subr.mxu0 %v397
        %473 = vmatpush1.msra.mxu0 %v396
        %474 = vmatprep.subr.mxu0 %v399
        %475 = vmatpush1.msra.mxu0 %v398
        %476 = vmatprep.subr.mxu0 %v401
        %477 = vmatpush1.msra.mxu0 %v400
        %478 = vmatprep.mubr.f32.mxu0 %v337
        %479 = vmatmul.mubr.f32.gmra.mrb[0].mxu0 %v336
        %v480 = vpop.f32.mrb[0].mxu0
        %v481 = vadd.f32 %v407, %v480
        %v482 = vpop.f32.mrb[0].mxu0
        %v483 = vadd.f32 %v411, %v482
        %484 = vdwg.mxu0
        %v485 = vtanh.pop %v481
        %v486 = vtanh.pop %v483
        %v487 = vld [vmem:[%s4] sm:$0xff]
        %v488 = vld [vmem:[%s4 + $0x8] sm:$0xff]
        %v489 = vld [vmem:[%s4 + $0x10] sm:$0xff]
        %v490 = vld [vmem:[%s4 + $0x18] sm:$0xff]
        %v491 = vld [vmem:[%s4 + $0x20] sm:$0xff]
        %v492 = vld [vmem:[%s4 + $0x28] sm:$0xff]
        %v493 = vld [vmem:[%s4 + $0x30] sm:$0xff]
        %v494 = vld [vmem:[%s4 + $0x38] sm:$0xff]
        %v495 = vld [vmem:[%s4 + $0x40] sm:$0xff]
        %v496 = vld [vmem:[%s4 + $0x48] sm:$0xff]
        %v497 = vld [vmem:[%s4 + $0x50] sm:$0xff]
        %v498 = vld [vmem:[%s4 + $0x58] sm:$0xff]
        %v499 = vld [vmem:[%s4 + $0x60] sm:$0xff]
        %v500 = vld [vmem:[%s4 + $0x68] sm:$0xff]
        %v501 = vld [vmem:[%s4 + $0x70] sm:$0xff]
        %v502 = vld [vmem:[%s4 + $0x78] sm:$0xff]
        %v503 = vld [vmem:[%s4 + $0x80] sm:$0xff]
        %v504 = vld [vmem:[%s4 + $0x88] sm:$0xff]
        %v505 = vld [vmem:[%s4 + $0x90] sm:$0xff]
        %v506 = vld [vmem:[%s4 + $0x98] sm:$0xff]
        %v507 = vld [vmem:[%s4 + $0xa0] sm:$0xff]
        %v508 = vld [vmem:[%s4 + $0xa8] sm:$0xff]
        %v509 = vld [vmem:[%s4 + $0xb0] sm:$0xff]
        %v510 = vld [vmem:[%s4 + $0xb8] sm:$0xff]
        %v511 = vld [vmem:[%s4 + $0xc0] sm:$0xff]
        %v512 = vld [vmem:[%s4 + $0xc8] sm:$0xff]
        %v513 = vld [vmem:[%s4 + $0xd0] sm:$0xff]
        %v514 = vld [vmem:[%s4 + $0xd8] sm:$0xff]
        %v515 = vld [vmem:[%s4 + $0xe0] sm:$0xff]
        %v516 = vld [vmem:[%s4 + $0xe8] sm:$0xff]
        %v517 = vld [vmem:[%s4 + $0xf0] sm:$0xff]
        %v518 = vld [vmem:[%s4 + $0xf8] sm:$0xff]
        %519 = vmatprep.subr.mxu0 0.0
        %520 = vmatpush1.msra.mxu0 %v487
        %521 = vmatprep.subr.mxu0 0.0
        %522 = vmatpush1.msra.mxu0 %v488
        %523 = vmatprep.subr.mxu0 0.0
        %524 = vmatpush1.msra.mxu0 %v489
        %525 = vmatprep.subr.mxu0 0.0
        %526 = vmatpush1.msra.mxu0 %v490
        %527 = vmatprep.subr.mxu0 0.0
        %528 = vmatpush1.msra.mxu0 %v491
        %529 = vmatprep.subr.mxu0 0.0
        %530 = vmatpush1.msra.mxu0 %v492
        %531 = vmatprep.subr.mxu0 0.0
        %532 = vmatpush1.msra.mxu0 %v493
        %533 = vmatprep.subr.mxu0 0.0
        %534 = vmatpush1.msra.mxu0 %v494
        %535 = vmatprep.subr.mxu0 0.0
        %536 = vmatpush1.msra.mxu0 %v495
        %537 = vmatprep.subr.mxu0 0.0
        %538 = vmatpush1.msra.mxu0 %v496
        %539 = vmatprep.subr.mxu0 0.0
        %540 = vmatpush1.msra.mxu0 %v497
        %541 = vmatprep.subr.mxu0 0.0
        %542 = vmatpush1.msra.mxu0 %v498
        %543 = vmatprep.subr.mxu0 0.0
        %544 = vmatpush1.msra.mxu0 %v499
        %545 = vmatprep.subr.mxu0 0.0
        %546 = vmatpush1.msra.mxu0 %v500
        %547 = vmatprep.subr.mxu0 0.0
        %548 = vmatpush1.msra.mxu0 %v501
        %549 = vmatprep.subr.mxu0 0.0
        %550 = vmatpush1.msra.mxu0 %v502
        %551 = vmatprep.subr.mxu0 0.0
        %552 = vmatpush1.msra.mxu0 %v503
        %553 = vmatprep.subr.mxu0 0.0
        %554 = vmatpush1.msra.mxu0 %v504
        %555 = vmatprep.subr.mxu0 0.0
        %556 = vmatpush1.msra.mxu0 %v505
        %557 = vmatprep.subr.mxu0 0.0
        %558 = vmatpush1.msra.mxu0 %v506
        %559 = vmatprep.subr.mxu0 0.0
        %560 = vmatpush1.msra.mxu0 %v507
        %561 = vmatprep.subr.mxu0 0.0
        %562 = vmatpush1.msra.mxu0 %v508
        %563 = vmatprep.subr.mxu0 0.0
        %564 = vmatpush1.msra.mxu0 %v509
        %565 = vmatprep.subr.mxu0 0.0
        %566 = vmatpush1.msra.mxu0 %v510
        %567 = vmatprep.subr.mxu0 0.0
        %568 = vmatpush1.msra.mxu0 %v511
        %569 = vmatprep.subr.mxu0 0.0
        %570 = vmatpush1.msra.mxu0 %v512
        %571 = vmatprep.subr.mxu0 0.0
        %572 = vmatpush1.msra.mxu0 %v513
        %573 = vmatprep.subr.mxu0 0.0
        %574 = vmatpush1.msra.mxu0 %v514
        %575 = vmatprep.subr.mxu0 0.0
        %576 = vmatpush1.msra.mxu0 %v515
        %577 = vmatprep.subr.mxu0 0.0
        %578 = vmatpush1.msra.mxu0 %v516
        %579 = vmatprep.subr.mxu0 0.0
        %580 = vmatpush1.msra.mxu0 %v517
        %581 = vmatprep.subr.mxu0 0.0
        %582 = vmatpush1.msra.mxu0 %v518
        %583 = vmatprep.mubr.f32.mxu0 %v486
        %584 = vmatmul.mubr.f32.gmra.mrb[0].mxu0 %v485
        %v585 = vpop.f32.mrb[0].mxu0
        %v586 = vadd.f32 0.0, %v585
        %v587 = vpop.f32.mrb[0].mxu0
        %588 = vdwg.mxu0
        %v589 = vld [vmem:[%s335] sm:$0xff]
        %vm590 = vcmp.eq.s32.totalorder %v589, 0
        %v591 = vsel %vm590, -1e+09, %v586
        %vm592 = vcmask 64512
        %v593 = vsel %vm592, %v591, -inf
        %594 = vmax.xlane.f32.xlu0 %v593
        %v595 = vpop.xlane.xlu0 %594
        %v596 = vsub.f32 %v591, %v595
        %v597 = vmul.f32 %v596, 1.442695
        %v598 = vpow.pop %v597
        %v599 = vsel %vm592, %v598, 0.0
        %600 = vadd.xlane.f32.xlu0 %v599
        %v601 = vpop.xlane.xlu0 %600
        %v602 = vrcp.pop %v601
        %v603 = vmul.f32 %v598, %v602
        %v604 = vld [vmem:[%s5] sm:$0xff]
        %v605 = vld [vmem:[%s5 + $0x8] sm:$0xff]
        %v607 = vsel %vm592, %v603, 0
        %609 = vmatprep.subr.mxu0 %v605
        %610 = vmatpush1.msra.mxu0 %v604
        %611 = vmatprep.subr.mxu0 0.0
        %612 = vmatpush1.msra.mxu0 0.0
        %613 = vmatprep.subr.mxu0 0.0
        %614 = vmatpush1.msra.mxu0 0.0
        %615 = vmatprep.subr.mxu0 0.0
        %616 = vmatpush1.msra.mxu0 0.0
        %617 = vmatprep.subr.mxu0 0.0
        %618 = vmatpush1.msra.mxu0 0.0
        %619 = vmatprep.subr.mxu0 0.0
        %620 = vmatpush1.msra.mxu0 0.0
        %621 = vmatprep.subr.mxu0 0.0
        %622 = vmatpush1.msra.mxu0 0.0
        %623 = vmatprep.subr.mxu0 0.0
        %624 = vmatpush1.msra.mxu0 0.0
        %625 = vmatprep.subr.mxu0 0.0
        %626 = vmatpush1.msra.mxu0 0.0
        %627 = vmatprep.subr.mxu0 0.0
        %628 = vmatpush1.msra.mxu0 0.0
        %629 = vmatprep.subr.mxu0 0.0
        %630 = vmatpush1.msra.mxu0 0.0
        %631 = vmatprep.subr.mxu0 0.0
        %632 = vmatpush1.msra.mxu0 0.0
        %633 = vmatprep.subr.mxu0 0.0
        %634 = vmatpush1.msra.mxu0 0.0
        %635 = vmatprep.subr.mxu0 0.0
        %636 = vmatpush1.msra.mxu0 0.0
        %637 = vmatprep.subr.mxu0 0.0
        %638 = vmatpush1.msra.mxu0 0.0
        %639 = vmatprep.subr.mxu0 0.0
        %640 = vmatpush1.msra.mxu0 0.0
        %641 = vmatprep.subr.mxu0 0.0
        %642 = vmatpush1.msra.mxu0 0.0
        %643 = vmatprep.subr.mxu0 0.0
        %644 = vmatpush1.msra.mxu0 0.0
        %645 = vmatprep.subr.mxu0 0.0
        %646 = vmatpush1.msra.mxu0 0.0
        %647 = vmatprep.subr.mxu0 0.0
        %648 = vmatpush1.msra.mxu0 0.0
        %649 = vmatprep.subr.mxu0 0.0
        %650 = vmatpush1.msra.mxu0 0.0
        %651 = vmatprep.subr.mxu0 0.0
        %652 = vmatpush1.msra.mxu0 0.0
        %653 = vmatprep.subr.mxu0 0.0
        %654 = vmatpush1.msra.mxu0 0.0
        %655 = vmatprep.subr.mxu0 0.0
        %656 = vmatpush1.msra.mxu0 0.0
        %657 = vmatprep.subr.mxu0 0.0
        %658 = vmatpush1.msra.mxu0 0.0
        %659 = vmatprep.subr.mxu0 0.0
        %660 = vmatpush1.msra.mxu0 0.0
        %661 = vmatprep.subr.mxu0 0.0
        %662 = vmatpush1.msra.mxu0 0.0
        %663 = vmatprep.subr.mxu0 0.0
        %664 = vmatpush1.msra.mxu0 0.0
        %665 = vmatprep.subr.mxu0 0.0
        %666 = vmatpush1.msra.mxu0 0.0
        %667 = vmatprep.subr.mxu0 0.0
        %668 = vmatpush1.msra.mxu0 0.0
        %669 = vmatprep.subr.mxu0 0.0
        %670 = vmatpush1.msra.mxu0 0.0
        %671 = vmatprep.subr.mxu0 0.0
        %672 = vmatpush1.msra.mxu0 0.0
        %673 = vmatprep.mubr.f32.mxu0 0.0
        %674 = vmatmul.mubr.f32.gmra.mrb[0].mxu0 %v607
        %v675 = vpop.f32.mrb[0].mxu0
        %v676 = vadd.f32 0.0, %v675
        %v677 = vpop.f32.mrb[0].mxu0
        %v678 = vadd.f32 0.0, %v677
        %679 = vdwg.mxu0
        %v680 = vmul.f32 %v336, %v676
        %v681 = vmul.f32 %v337, %v678
        %v682 = vld [vmem:[%s6] sm:$0xff]
        %v683 = vld [vmem:[%s6 + $0x8] sm:$0xff]
        %v684 = vld [vmem:[%s6 + $0x10] sm:$0xff]
        %v685 = vld [vmem:[%s6 + $0x18] sm:$0xff]
        %v686 = vld [vmem:[%s6 + $0x20] sm:$0xff]
        %v687 = vld [vmem:[%s6 + $0x28] sm:$0xff]
        %v688 = vld [vmem:[%s6 + $0x30] sm:$0xff]
        %v689 = vld [vmem:[%s6 + $0x38] sm:$0xff]
        %v690 = vld [vmem:[%s6 + $0x40] sm:$0xff]
        %v691 = vld [vmem:[%s6 + $0x48] sm:$0xff]
        %v692 = vld [vmem:[%s6 + $0x50] sm:$0xff]
        %v693 = vld [vmem:[%s6 + $0x58] sm:$0xff]
        %v694 = vld [vmem:[%s6 + $0x60] sm:$0xff]
        %v695 = vld [vmem:[%s6 + $0x68] sm:$0xff]
        %v696 = vld [vmem:[%s6 + $0x70] sm:$0xff]
        %v697 = vld [vmem:[%s6 + $0x78] sm:$0xff]
        %v698 = vld [vmem:[%s6 + $0x80] sm:$0xff]
        %v699 = vld [vmem:[%s6 + $0x88] sm:$0xff]
        %v700 = vld [vmem:[%s6 + $0x90] sm:$0xff]
        %v701 = vld [vmem:[%s6 + $0x98] sm:$0xff]
        %v702 = vld [vmem:[%s6 + $0xa0] sm:$0xff]
        %v703 = vld [vmem:[%s6 + $0xa8] sm:$0xff]
        %v704 = vld [vmem:[%s6 + $0xb0] sm:$0xff]
        %v705 = vld [vmem:[%s6 + $0xb8] sm:$0xff]
        %v706 = vld [vmem:[%s6 + $0xc0] sm:$0xff]
        %v707 = vld [vmem:[%s6 + $0xc8] sm:$0xff]
        %v708 = vld [vmem:[%s6 + $0xd0] sm:$0xff]
        %v709 = vld [vmem:[%s6 + $0xd8] sm:$0xff]
        %v710 = vld [vmem:[%s6 + $0xe0] sm:$0xff]
        %v711 = vld [vmem:[%s6 + $0xe8] sm:$0xff]
        %v712 = vld [vmem:[%s6 + $0xf0] sm:$0xff]
        %v713 = vld [vmem:[%s6 + $0xf8] sm:$0xff]
        %v714 = vld [vmem:[%s7] sm:$0xff]
        %715 = vmatprep.subr.mxu0 0.0
        %716 = vmatpush1.msra.mxu0 %v714
        %717 = vmatprep.subr.mxu0 0.0
        %718 = vmatpush1.msra.mxu0 0.0
        %719 = vmatprep.subr.mxu0 0.0
        %720 = vmatpush1.msra.mxu0 0.0
        %721 = vmatprep.subr.mxu0 0.0
        %722 = vmatpush1.msra.mxu0 0.0
        %723 = vmatprep.subr.mxu0 0.0
        %724 = vmatpush1.msra.mxu0 0.0
        %725 = vmatprep.subr.mxu0 0.0
        %726 = vmatpush1.msra.mxu0 0.0
        %727 = vmatprep.subr.mxu0 0.0
        %728 = vmatpush1.msra.mxu0 0.0
        %729 = vmatprep.subr.mxu0 0.0
        %730 = vmatpush1.msra.mxu0 0.0
        %731 = vmatprep.subr.mxu0 0.0
        %732 = vmatpush1.msra.mxu0 0.0
        %733 = vmatprep.subr.mxu0 0.0
        %734 = vmatpush1.msra.mxu0 0.0
        %735 = vmatprep.subr.mxu0 0.0
        %736 = vmatpush1.msra.mxu0 0.0
        %737 = vmatprep.subr.mxu0 0.0
        %738 = vmatpush1.msra.mxu0 0.0
        %739 = vmatprep.subr.mxu0 0.0
        %740 = vmatpush1.msra.mxu0 0.0
        %741 = vmatprep.subr.mxu0 0.0
        %742 = vmatpush1.msra.mxu0 0.0
        %743 = vmatprep.subr.mxu0 0.0
        %744 = vmatpush1.msra.mxu0 0.0
        %745 = vmatprep.subr.mxu0 0.0
        %746 = vmatpush1.msra.mxu0 0.0
        %747 = vmatprep.subr.mxu0 0.0
        %748 = vmatpush1.msra.mxu0 0.0
        %749 = vmatprep.subr.mxu0 0.0
        %750 = vmatpush1.msra.mxu0 0.0
        %751 = vmatprep.subr.mxu0 0.0
        %752 = vmatpush1.msra.mxu0 0.0
        %753 = vmatprep.subr.mxu0 0.0
        %754 = vmatpush1.msra.mxu0 0.0
        %755 = vmatprep.subr.mxu0 0.0
        %756 = vmatpush1.msra.mxu0 0.0
        %757 = vmatprep.subr.mxu0 0.0
        %758 = vmatpush1.msra.mxu0 0.0
        %759 = vmatprep.subr.mxu0 0.0
        %760 = vmatpush1.msra.mxu0 0.0
        %761 = vmatprep.subr.mxu0 0.0
        %762 = vmatpush1.msra.mxu0 0.0
        %763 = vmatprep.subr.mxu0 0.0
        %764 = vmatpush1.msra.mxu0 0.0
        %765 = vmatprep.subr.mxu0 0.0
        %766 = vmatpush1.msra.mxu0 0.0
        %767 = vmatprep.subr.mxu0 0.0
        %768 = vmatpush1.msra.mxu0 0.0
        %769 = vmatprep.subr.mxu0 0.0
        %770 = vmatpush1.msra.mxu0 0.0
        %771 = vmatprep.subr.mxu0 0.0
        %772 = vmatpush1.msra.mxu0 0.0
        %773 = vmatprep.subr.mxu0 0.0
        %774 = vmatpush1.msra.mxu0 0.0
        %775 = vmatprep.subr.mxu0 0.0
        %776 = vmatpush1.msra.mxu0 0.0
        %777 = vmatprep.subr.mxu0 0.0
        %778 = vmatpush1.msra.mxu0 0.0
        %779 = vmatprep.mubr.f32.mxu0 0.0
        %780 = vmatmul.mubr.f32.gmra.mrb[0].mxu0 %v607
        %v781 = vpop.f32.mrb[0].mxu0
        %v782 = vadd.f32 0.0, %v781
        %v783 = vpop.f32.mrb[0].mxu0
        %784 = vdwg.mxu0
        %785 = vmatprep.subr.mxu0 0.0
        %786 = vmatpush1.msra.mxu0 %v682
        %787 = vmatprep.subr.mxu0 0.0
        %788 = vmatpush1.msra.mxu0 %v683
        %789 = vmatprep.subr.mxu0 0.0
        %790 = vmatpush1.msra.mxu0 %v684
        %791 = vmatprep.subr.mxu0 0.0
        %792 = vmatpush1.msra.mxu0 %v685
        %793 = vmatprep.subr.mxu0 0.0
        %794 = vmatpush1.msra.mxu0 %v686
        %795 = vmatprep.subr.mxu0 0.0
        %796 = vmatpush1.msra.mxu0 %v687
        %797 = vmatprep.subr.mxu0 0.0
        %798 = vmatpush1.msra.mxu0 %v688
        %799 = vmatprep.subr.mxu0 0.0
        %800 = vmatpush1.msra.mxu0 %v689
        %801 = vmatprep.subr.mxu0 0.0
        %802 = vmatpush1.msra.mxu0 %v690
        %803 = vmatprep.subr.mxu0 0.0
        %804 = vmatpush1.msra.mxu0 %v691
        %805 = vmatprep.subr.mxu0 0.0
        %806 = vmatpush1.msra.mxu0 %v692
        %807 = vmatprep.subr.mxu0 0.0
        %808 = vmatpush1.msra.mxu0 %v693
        %809 = vmatprep.subr.mxu0 0.0
        %810 = vmatpush1.msra.mxu0 %v694
        %811 = vmatprep.subr.mxu0 0.0
        %812 = vmatpush1.msra.mxu0 %v695
        %813 = vmatprep.subr.mxu0 0.0
        %814 = vmatpush1.msra.mxu0 %v696
        %815 = vmatprep.subr.mxu0 0.0
        %816 = vmatpush1.msra.mxu0 %v697
        %817 = vmatprep.subr.mxu0 0.0
        %818 = vmatpush1.msra.mxu0 %v698
        %819 = vmatprep.subr.mxu0 0.0
        %820 = vmatpush1.msra.mxu0 %v699
        %821 = vmatprep.subr.mxu0 0.0
        %822 = vmatpush1.msra.mxu0 %v700
        %823 = vmatprep.subr.mxu0 0.0
        %824 = vmatpush1.msra.mxu0 %v701
        %825 = vmatprep.subr.mxu0 0.0
        %826 = vmatpush1.msra.mxu0 %v702
        %827 = vmatprep.subr.mxu0 0.0
        %828 = vmatpush1.msra.mxu0 %v703
        %829 = vmatprep.subr.mxu0 0.0
        %830 = vmatpush1.msra.mxu0 %v704
        %831 = vmatprep.subr.mxu0 0.0
        %832 = vmatpush1.msra.mxu0 %v705
        %833 = vmatprep.subr.mxu0 0.0
        %834 = vmatpush1.msra.mxu0 %v706
        %835 = vmatprep.subr.mxu0 0.0
        %836 = vmatpush1.msra.mxu0 %v707
        %837 = vmatprep.subr.mxu0 0.0
        %838 = vmatpush1.msra.mxu0 %v708
        %839 = vmatprep.subr.mxu0 0.0
        %840 = vmatpush1.msra.mxu0 %v709
        %841 = vmatprep.subr.mxu0 0.0
        %842 = vmatpush1.msra.mxu0 %v710
        %843 = vmatprep.subr.mxu0 0.0
        %844 = vmatpush1.msra.mxu0 %v711
        %845 = vmatprep.subr.mxu0 0.0
        %846 = vmatpush1.msra.mxu0 %v712
        %847 = vmatprep.subr.mxu0 0.0
        %848 = vmatpush1.msra.mxu0 %v713
        %849 = vmatprep.mubr.f32.mxu0 %v681
        %850 = vmatmul.mubr.f32.gmra.mrb[0].mxu0 %v680
        %v851 = vpop.f32.mrb[0].mxu0
        %v852 = vadd.f32 %v782, %v851
        %v853 = vpop.f32.mrb[0].mxu0
        %854 = vdwg.mxu0
        %855 = vst [vmem:[%s326] sm:$0xff] %v852
        %s856 = sand.u32 %s209, 1
        %s857 = scalar_lea.sflag [#allocation4], %s856
        %s858 = sand.u32 %s209, 1
        %s859 = smul.addr %s858, 8
        %s860 = scalar_lea.vmem [#allocation5], %s859
        // Predicated region
        $region57: #{tpu_custom_call.1} parent=51 // pred_check
          %p861 = pneg %p219
        $region58: #{tpu_custom_call.1} parent=51 // pred_check_branch
          %863 = sbr.rel (%p861) target = $region60
        $region59: #{tpu_custom_call.1} parent=51 // pred_region
          %s865 = ssub.s32 128, 128
          %866 = vsyncadd %s857, %s865
          %s867 = smul.addr %s23, 128
          %s868 = scalar_lea.hbm %s8, %s867
          %s870 = sshll.u32 %s860, 4
          %s871 = int_to_ptr.vmem [resolvable:$true] %s870
          %873 = dma.vmem_to_hbm [thread:$0]  %s871, 128, %s868, %s857
        $region60: #{tpu_custom_call.1} parent=51 // pred_fallthru
          _
      $region52: #{tpu_custom_call.1} parent=5 // pred_fallthru
        _
      %p874 = scmp.le.s32.totalorder 2, %s18
      // Predicated region
      $region61: #{tpu_custom_call.1} parent=5 // pred_check
        %p875 = pneg %p874
      $region62: #{tpu_custom_call.1} parent=5 // pred_check_branch
        %877 = sbr.rel (%p875) target = $region64
      $region63: #{tpu_custom_call.1} parent=5 // pred_region
        %s878 = ssub.s32 %s18, 2
        // Predicated region
        $region65: #{tpu_custom_call.1} parent=63 // pred_check
          %p879 = pneg %p225
        $region66: #{tpu_custom_call.1} parent=63 // pred_check_branch
          %881 = sbr.rel (%p879) target = $region68
        $region67: #{tpu_custom_call.1} parent=63 // pred_region
          %s882 = sand.u32 %s210, 1
          %s883 = scalar_lea.sflag [#allocation4], %s882
          %s884 = sand.u32 %s210, 1
          %s885 = smul.addr %s884, 8
          %s886 = scalar_lea.vmem [#allocation5], %s885
          %887 = dma.done %s883, 128
        $region68: #{tpu_custom_call.1} parent=63 // pred_fallthru
          _
      $region64: #{tpu_custom_call.1} parent=5 // pred_fallthru
        _
    $region6: #{tpu_custom_call.1} parent=1 // loop_footer
      %s22 = sadd.s32 1, %s18
    $region7: #{tpu_custom_call.1} parent=1 // loop_footer_branch
      %17 = sbr.rel target = $region3
    $region8: #{tpu_custom_call.1} parent=1 // loop_exit
      _
    %888 = vsyncpa [#allocation3], 1
    %s889 = scalar_lea.sflag [#allocation3], 1
    %890 = vsyncpa %s889, 1
    %891 = vsyncpa [#allocation4], 1
    %s892 = scalar_lea.sflag [#allocation4], 1
    %893 = vsyncpa %s892, 1

</llo_original>
